<compile_context>
chip_gen: v7x
topology: tpu7x:2x2x1
jax: 0.10.0
libtpu: 0.0.40
codegen_flags: <defaults>
</compile_context>

<pallas_src>
import jax
import jax.numpy as jnp
from jax.experimental import pallas as pl
from jax.experimental.pallas import tpu as pltpu

GLOBAL_BITS = 5
THRESHOLD = 1.0
_N = float(2 ** GLOBAL_BITS - 1)
_LANES = 128
_MiB = 1024 * 1024


def _quantize_f32(x_f32):
    """Exact same op order as the PyTorch forward (two separate multiplies)."""
    y = x_f32 * jnp.float32(_N / THRESHOLD)
    y = y * jnp.float32(0.4)
    q = jnp.round(y) * jnp.float32(THRESHOLD / _N)
    return jnp.clip(q, 0.0, THRESHOLD)


def _sigmoidquant_kernel(x_ref, o_ref):
    # Upcast to f32 so rounding matches the float32 PyTorch reference even for
    # sub-32-bit inputs; cast back to the output dtype on store.
    x = x_ref[...].astype(jnp.float32)
    o_ref[...] = _quantize_f32(x).astype(o_ref.dtype)


def _round_up(a, b):
    return ((a + b - 1) // b) * b


def sigmoidquant(x, *, block_bytes=8 * _MiB):
    """Elementwise activation quantization. Accepts any shape; returns same shape/dtype."""
    orig_shape = x.shape
    orig_dtype = x.dtype
    itemsize = jnp.dtype(orig_dtype).itemsize
    total = int(x.size)

    if total == 0:
        return x

    flat = x.reshape(-1)
    rows = total // _LANES
    tail = total - rows * _LANES

    # Rare path: handle the <128-element tail with a tiny XLA expression
    # instead of a full-tensor jnp.pad copy before the kernel.
    tail_out = None
    if tail:
        tail_out = _quantize_f32(
            flat[rows * _LANES:].astype(jnp.float32)
        ).astype(orig_dtype)
    if rows == 0:
        return tail_out.reshape(orig_shape)

    x2d = flat[: rows * _LANES].reshape(rows, _LANES)

    # Minimum sublane multiple for a legal block: (8,128) f32, (16,128) bf16,
    # (32,128) int8/fp8.
    min_sub = max(8, 32 // itemsize)
    # Max rows per block so one block is ~block_bytes, rounded down to min_sub.
    max_tr = max(min_sub, (block_bytes // (_LANES * itemsize)) // min_sub * min_sub)

    if rows > max_tr:
        # Large tensor: big aligned blocks; Pallas masks the partial last block.
        tr = max_tr
    elif rows > 4 * min_sub:
        # Mid-size tensor: don't collapse to a single grid step (no pipelining).
        # Target ~8 steps so DMA/compute overlap and v7x megacore gets >=4
        # steps per TensorCore.
        tr = max(min_sub, _round_up(pl.cdiv(rows, 8), min_sub))
    else:
        # Tiny tensor: single full-extent block (always a legal block shape).
        tr = rows

    grid = (pl.cdiv(rows, tr),)

    # Lift the scoped-VMEM limit to cover in+out double buffering plus Mosaic
    # scratch headroom; cap at 48 MiB for v7x's 64 MiB-per-TC physical VMEM.
    block_footprint = tr * _LANES * itemsize
    vmem_limit = int(min(48 * _MiB, max(16 * _MiB, 4 * block_footprint + 8 * _MiB)))

    cost = pl.CostEstimate(
        flops=5 * rows * _LANES,
        transcendentals=0,
        bytes_accessed=2 * rows * _LANES * itemsize,
    )

    out2d = pl.pallas_call(
        _sigmoidquant_kernel,
        out_shape=jax.ShapeDtypeStruct((rows, _LANES), orig_dtype),
        grid_spec=pltpu.PrefetchScalarGridSpec(
            num_scalar_prefetch=0,
            grid=grid,
            in_specs=[pl.BlockSpec((tr, _LANES), lambda i: (i, 0))],
            out_specs=pl.BlockSpec((tr, _LANES), lambda i: (i, 0)),
        ),
        compiler_params=pltpu.CompilerParams(
            dimension_semantics=("parallel",),
            vmem_limit_bytes=vmem_limit,
        ),
        cost_estimate=cost,
    )(x2d)

    out_flat = out2d.reshape(-1)
    if tail:
        out_flat = jnp.concatenate([out_flat, tail_out])
    return out_flat.reshape(orig_shape)


def sigmoidquant_ref(x):
    return _quantize_f32(x.astype(jnp.float32)).astype(x.dtype)


if __name__ == "__main__":
    key = jax.random.PRNGKey(0)

    # NCHW-style activation tensor (total divisible by 128 -> kernel-only path).
    x = jax.random.normal(key, (2, 4, 16, 16), dtype=jnp.float32) * 2.0
    out = jax.block_until_ready(sigmoidquant(x))
    ref = sigmoidquant_ref(x)
    assert out.shape == x.shape and out.dtype == x.dtype
    assert jnp.allclose(out, ref, atol=1e-6), "f32 mismatch vs reference"

    # Mid-size tensor to exercise the multi-step (pipelined) grid path.
    xm = jax.random.normal(jax.random.PRNGKey(3), (2, 8, 32, 32), dtype=jnp.float32) * 2.0
    out_m = jax.block_until_ready(sigmoidquant(xm))
    assert jnp.allclose(out_m, sigmoidquant_ref(xm), atol=1e-6), "multi-block mismatch"

    # Odd-sized tensor to exercise the prefix-kernel + XLA-tail path (no jnp.pad).
    x_odd = jax.random.normal(jax.random.PRNGKey(1), (3, 5, 7, 11), dtype=jnp.float32) * 2.0
    out_odd = jax.block_until_ready(sigmoidquant(x_odd))
    assert jnp.allclose(out_odd, sigmoidquant_ref(x_odd), atol=1e-6), "odd-shape mismatch"

    # bf16 input: kernel upcasts to f32 internally, identical op order as ref.
    x_bf = (jax.random.normal(jax.random.PRNGKey(2), (2, 4, 16, 16)) * 2.0).astype(jnp.bfloat16)
    out_bf = jax.block_until_ready(sigmoidquant(x_bf))
    assert out_bf.dtype == jnp.bfloat16
    assert jnp.allclose(out_bf.astype(jnp.float32),
                        sigmoidquant_ref(x_bf).astype(jnp.float32), atol=5e-2), "bf16 mismatch"

    print("KERNEL_OK")
</pallas_src>

<mosaic_0001>
module attributes {stable_mosaic.version = 11 : i64} {
  func.func @_sigmoidquant_kernel(%arg0: i32, %arg1: memref<16x128xf32, #tpu.memory_space<vmem>>, %arg2: memref<16x128xf32, #tpu.memory_space<vmem>>) attributes {dimension_semantics = [#tpu.dimension_semantics<parallel>], iteration_bounds = array<i64: 1>, scalar_prefetch = 0 : i64, scratch_operands = 0 : i64, tpu.core_type = #tpu.core_type<tc>, window_params = [{transform_indices = @transform_0, window_bounds = array<i64: 16, 128>}, {transform_indices = @transform_1, window_bounds = array<i64: 16, 128>}]} {
    %c0 = arith.constant 0 : index
    %c0_0 = arith.constant 0 : index
    %0 = vector.load %arg1[%c0, %c0_0] : memref<16x128xf32, #tpu.memory_space<vmem>>, vector<16x128xf32>
    %cst = arith.constant 3.100000e+01 : f32
    %1 = vector.broadcast %cst : f32 to vector<16x128xf32>
    %2 = arith.mulf %0, %1 : vector<16x128xf32>
    %cst_1 = arith.constant 4.000000e-01 : f32
    %3 = vector.broadcast %cst_1 : f32 to vector<16x128xf32>
    %4 = arith.mulf %2, %3 : vector<16x128xf32>
    %5 = math.roundeven %4 : vector<16x128xf32>
    %cst_2 = arith.constant 0.0322580636 : f32
    %6 = vector.broadcast %cst_2 : f32 to vector<16x128xf32>
    %7 = arith.mulf %5, %6 : vector<16x128xf32>
    %cst_3 = arith.constant 0.000000e+00 : f32
    %cst_4 = arith.constant 1.000000e+00 : f32
    %8 = vector.broadcast %cst_3 : f32 to vector<16x128xf32>
    %9 = arith.maximumf %8, %7 : vector<16x128xf32>
    %10 = vector.broadcast %cst_4 : f32 to vector<16x128xf32>
    %11 = arith.minimumf %10, %9 : vector<16x128xf32>
    %c0_5 = arith.constant 0 : index
    %c0_6 = arith.constant 0 : index
    %12 = vector.load %arg2[%c0_5, %c0_6] : memref<16x128xf32, #tpu.memory_space<vmem>>, vector<16x128xf32>
    tpu.vector_store %arg2[%c0_5, %c0_6], %11 {strides = array<i32>} : memref<16x128xf32, #tpu.memory_space<vmem>>, vector<16x128xf32>,
    return
  }
  func.func @transform_0(%arg0: i32) -> (i32, i32) {
    %c0_i32 = arith.constant 0 : i32
    %c0_i32_0 = arith.constant 0 : i32
    return %arg0, %c0_i32 : i32, i32
  }
  func.func @transform_1(%arg0: i32) -> (i32, i32) {
    %c0_i32 = arith.constant 0 : i32
    %c0_i32_0 = arith.constant 0 : i32
    return %arg0, %c0_i32 : i32, i32
  }
}

</mosaic_0001>

<llo_original>
// kernel: tpu_custom_call.1
$region0: #{tpu_custom_call.1}
  #allocation0 [shape = 'u32[]', space=smem, size = 0x4, offset = 0x4, fixed_abs, tag = 'smem constant byte address 0x4 - core index']
  #allocation1 [shape = 'u32[144,128]{1,0:T(1,128)}', space=vmem, size = 0x12000, scoped, tag = 'internal scratch']
  %s0 = inlined_call_operand.hbm [shape: f32[16,128], index: 0, kind: input, shape index: {}]
  %s1 = inlined_call_operand.hbm [shape: f32[16,128], index: 1, kind: output, shape index: {}]
  %s2 = sld [smem:[#allocation0]]
  $region18: #{tpu_custom_call.1} parent=0
    _
  %s4 = ssub.s32 1, %s2
  %s5 = scalar_select 0, %s4, %s2
  $region1: #{tpu_custom_call.1} parent=0
    #allocation2 [shape = 'u8[8192]{0}', space=vmem, size = 0x2000, scoped, tag = 'input window, operand 0, single buffered']
    #allocation3 [shape = 's32[1]{0}', space=sflag, size = 0x4, scoped, tag = 'scoped memory for tpu_custom_call.1']
    #allocation4 [shape = 's32[1]{0}', space=sflag, size = 0x4, scoped, tag = 'scoped memory for tpu_custom_call.1']
    #allocation5 [shape = 'u8[8192]{0}', space=vmem, size = 0x2000, scoped, tag = 'output window, operand 0, single buffered']
    %6 = vsyncpa [#allocation3], 0
    %7 = vsyncpa [#allocation4], 0
    // Predicated region
    $region2: #{tpu_custom_call.1} parent=1 // pred_check
      _
    $region3: #{tpu_custom_call.1} parent=1 // pred_check_branch
      %9 = sbr.rel (0) target = $region5
    $region4: #{tpu_custom_call.1} parent=1 // pred_region
      %s11 = ssub.s32 256, 256
      %12 = vsyncadd [#allocation3], %s11
      %s13 = sshll.u32 [#allocation2], 4
      %s14 = int_to_ptr.vmem [resolvable:$true] %s13
      %19 = dma.hbm_to_vmem [thread:$0]  %s0, 256, %s14, [#allocation3], 128, 128, 8
    $region5: #{tpu_custom_call.1} parent=1 // pred_fallthru
      _
    // Predicated region
    $region6: #{tpu_custom_call.1} parent=1 // pred_check
      _
    $region7: #{tpu_custom_call.1} parent=1 // pred_check_branch
      %21 = sbr.rel (0) target = $region9
    $region8: #{tpu_custom_call.1} parent=1 // pred_region
      %22 = dma.done [#allocation3], 256
    $region9: #{tpu_custom_call.1} parent=1 // pred_fallthru
      _
    %v23 = vld [vmem:[#allocation2] sm:$0xff]
    %v24 = vld [vmem:[#allocation2 + $0x8] sm:$0xff]
    %v25 = vmul.f32 %v23, 31.0
    %v26 = vmul.f32 %v24, 31.0
    %v27 = vmul.f32 %v25, 0.4
    %v28 = vmul.f32 %v26, 0.4
    %v29 = vround.ne.pseudo %v27
    %v30 = vround.ne.pseudo %v28
    %v31 = vmul.f32 %v29, 0.032258064
    %v32 = vmul.f32 %v30, 0.032258064
    %v33 = vmax.f32 %v31, 0.0
    %v34 = vmax.f32 %v32, 0.0
    %v35 = vmin.f32 %v33, 1.0
    %v36 = vmin.f32 %v34, 1.0
    %37 = vst [vmem:[#allocation5] sm:$0xff] %v35
    %38 = vst [vmem:[#allocation5 + $0x8] sm:$0xff] %v36
    // Predicated region
    $region10: #{tpu_custom_call.1} parent=1 // pred_check
      _
    $region11: #{tpu_custom_call.1} parent=1 // pred_check_branch
      %40 = sbr.rel (0) target = $region13
    $region12: #{tpu_custom_call.1} parent=1 // pred_region
      %s42 = ssub.s32 256, 256
      %43 = vsyncadd [#allocation4], %s42
      %s44 = sshll.u32 [#allocation5], 4
      %s45 = int_to_ptr.vmem [resolvable:$true] %s44
      %50 = dma.vmem_to_hbm [thread:$0]  %s45, 256, %s1, [#allocation4], 128, 128, 8
    $region13: #{tpu_custom_call.1} parent=1 // pred_fallthru
      _
    // Predicated region
    $region14: #{tpu_custom_call.1} parent=1 // pred_check
      _
    $region15: #{tpu_custom_call.1} parent=1 // pred_check_branch
      %52 = sbr.rel (0) target = $region17
    $region16: #{tpu_custom_call.1} parent=1 // pred_region
      %53 = dma.done [#allocation4], 256
    $region17: #{tpu_custom_call.1} parent=1 // pred_fallthru
      _
    %54 = vsyncpa [#allocation3], 1
    %55 = vsyncpa [#allocation4], 1

</llo_original>
